<compile_context>
chip_gen: v7x
topology: tpu7x:2x2x1
jax: 0.10.0
libtpu: 0.0.40
codegen_flags: <defaults>
</compile_context>

<pallas_src>
import jax
import jax.numpy as jnp
from jax.experimental import pallas as pl
from jax.experimental.pallas import tpu as pltpu


def linear_sub_relu_kernel(xw_ref, b_ref, o_ref):
    # xw_ref: (B+1, IN) f32 in VMEM; rows [0:B] are x, row B is the weight.
    # b_ref : (1,) f32 in SMEM, already holding (bias - other).
    # o_ref : (B, OUT=1) f32 in VMEM.
    B = o_ref.shape[0]
    x = xw_ref[0:B, :]                               # (B, IN)
    w = xw_ref[B:B + 1, :]                           # (1, IN) -> broadcasts over B
    acc = jnp.sum(x * w, axis=-1, keepdims=True)     # VPU mul + XLU lane reduce
    o_ref[...] = jnp.maximum(acc + b_ref[0], 0.0).astype(o_ref.dtype)


@jax.jit
def model_forward(x, weight, bias, other):
    """x: (B, IN) f32; weight: (OUT, IN) f32 (PyTorch layout); bias: (OUT,) f32.

    Specialized for OUT == 1 (as in the reference module).
    """
    B, IN = x.shape
    OUT = weight.shape[0]
    assert OUT == 1, "kernel is specialized for output_size == 1"

    # Fold bias - other into a single SMEM scalar (fused under this jit).
    b_fused = (bias.astype(jnp.float32)
               - jnp.asarray(other, jnp.float32)).reshape(1)

    # One VMEM operand holding both x and the weight row -> one input DMA
    # instead of two.
    xw = jnp.concatenate(
        [x.astype(jnp.float32), weight.astype(jnp.float32)], axis=0
    )  # (B+1, IN)

    return pl.pallas_call(
        linear_sub_relu_kernel,
        out_shape=jax.ShapeDtypeStruct((B, OUT), jnp.float32),
        in_specs=[
            pl.BlockSpec(memory_space=pltpu.MemorySpace.VMEM),   # [x; weight]
            pl.BlockSpec(memory_space=pltpu.MemorySpace.SMEM),   # bias - other
        ],
        out_specs=pl.BlockSpec(memory_space=pltpu.MemorySpace.VMEM),
    )(xw, b_fused)


if __name__ == "__main__":
    output_size = 1
    other = 1
    IN_FEATURES = 12
    BATCH = 1

    key = jax.random.PRNGKey(0)
    kx, kw, kb = jax.random.split(key, 3)

    # Deterministic parameter init (mimics nn.Linear uniform(-1/sqrt(IN), 1/sqrt(IN)))
    bound = 1.0 / (IN_FEATURES ** 0.5)
    weight = jax.random.uniform(kw, (output_size, IN_FEATURES), jnp.float32,
                                minval=-bound, maxval=bound)
    bias = jax.random.uniform(kb, (output_size,), jnp.float32,
                              minval=-bound, maxval=bound)
    x1 = jax.random.normal(kx, (BATCH, IN_FEATURES), jnp.float32)

    out = model_forward(x1, weight, bias, other)
    out = jax.block_until_ready(out)

    # Reference check in plain JAX (unfused, mirrors the PyTorch module)
    ref = jnp.maximum(x1 @ weight.T + bias - other, 0.0)
    assert out.shape == (BATCH, output_size)
    assert jnp.allclose(out, ref, atol=1e-5), (out, ref)

    print("KERNEL_OK")
</pallas_src>

<mosaic_0001>
module attributes {stable_mosaic.version = 11 : i64} {
  func.func @linear_sub_relu_kernel(%arg0: memref<2x12xf32, #tpu.memory_space<vmem>>, %arg1: memref<1xf32, #tpu.memory_space<smem>>, %arg2: memref<1x1xf32, #tpu.memory_space<vmem>>) attributes {dimension_semantics = [], scalar_prefetch = 0 : i64, scratch_operands = 0 : i64, tpu.core_type = #tpu.core_type<tc>} {
    %c0 = arith.constant 0 : index
    %c0_0 = arith.constant 0 : index
    %0 = vector.load %arg0[%c0, %c0_0] : memref<2x12xf32, #tpu.memory_space<vmem>>, vector<1x12xf32>
    %c1 = arith.constant 1 : index
    %c0_1 = arith.constant 0 : index
    %1 = vector.load %arg0[%c1, %c0_1] : memref<2x12xf32, #tpu.memory_space<vmem>>, vector<1x12xf32>
    %2 = arith.mulf %0, %1 : vector<1x12xf32>
    %cst = arith.constant dense<0.000000e+00> : vector<1xf32>
    %3 = vector.multi_reduction <add>, %2, %cst [1] : vector<1x12xf32> to vector<1xf32>
    %4 = vector.shape_cast %3 : vector<1xf32> to vector<1x1xf32>
    %c0_2 = arith.constant 0 : index
    %5 = memref.load %arg1[%c0_2] : memref<1xf32, #tpu.memory_space<smem>>
    %6 = vector.broadcast %5 : f32 to vector<1x1xf32>
    %7 = arith.addf %4, %6 : vector<1x1xf32>
    %cst_3 = arith.constant 0.000000e+00 : f32
    %8 = vector.broadcast %cst_3 : f32 to vector<1x1xf32>
    %9 = arith.maximumf %7, %8 : vector<1x1xf32>
    %c0_4 = arith.constant 0 : index
    %c0_5 = arith.constant 0 : index
    %10 = vector.load %arg2[%c0_4, %c0_5] : memref<1x1xf32, #tpu.memory_space<vmem>>, vector<1x1xf32>
    tpu.vector_store %arg2[%c0_4, %c0_5], %9 {strides = array<i32>} : memref<1x1xf32, #tpu.memory_space<vmem>>, vector<1x1xf32>,
    return
  }
}

</mosaic_0001>

<llo_original>
// kernel: model_forward.1
$region0: #{model_forward.1}
  #allocation0 [shape = 'u32[]', space=smem, size = 0x4, offset = 0x4, fixed_abs, tag = 'smem constant byte address 0x4 - core index']
  #allocation1 [shape = 'u32[144,128]{1,0:T(1,128)}', space=vmem, size = 0x12000, scoped, tag = 'internal scratch']
  #allocation2 [shape = 'f32[1]{0:T(128)S(6)}', space=smem, size = 0x200, scoped, tag = 'scoped memory for model_forward.1']
  %s0 = inlined_call_operand.vmem [shape: f32[2,12], index: 0, kind: input, shape index: {}]
  %s1 = inlined_call_operand.<no memory space> [shape: f32[1], index: 1, kind: input, shape index: {}]
  %s2 = inlined_call_operand.hbm [shape: f32[1,1], index: 2, kind: output, shape index: {}]
  %s3 = sld [smem:[#allocation0]]
  $region18: #{model_forward.1} parent=0
    _
  %s5 = ssub.s32 1, %s3
  %s6 = scalar_select 0, %s5, %s3
  %7 = sst [smem:[#allocation2]] %s1
  $region1: #{model_forward.1} parent=0
    #allocation3 [shape = 'u8[512]{0}', space=vmem, size = 0x400, scoped, tag = 'output window, operand 0, single buffered']
    #allocation4 [shape = 's32[1]{0}', space=sflag, size = 0x4, scoped, tag = 'scoped memory for model_forward.1']
    %8 = vsyncpa [#allocation4], 0
    // Predicated region
    $region2: #{model_forward.1} parent=1 // pred_check
      _
    $region3: #{model_forward.1} parent=1 // pred_check_branch
      %10 = sbr.rel (0) target = $region5
    $region4: #{model_forward.1} parent=1 // pred_region
      _
    $region5: #{model_forward.1} parent=1 // pred_fallthru
      _
    // Predicated region
    $region6: #{model_forward.1} parent=1 // pred_check
      _
    $region7: #{model_forward.1} parent=1 // pred_check_branch
      %12 = sbr.rel (0) target = $region9
    $region8: #{model_forward.1} parent=1 // pred_region
      _
    $region9: #{model_forward.1} parent=1 // pred_fallthru
      _
    %v13 = vld [vmem:[%s0] sm:$0x1]
    %v14 = vld [vmem:[%s0 + $0x1] sm:$0x1]
    %v15 = vmul.f32 %v13, %v14
    %vm16 = vcmask 90112
    %v17 = vsel %vm16, %v15, 0.0
    %18 = vadd.xlane.f32.xlu0 %v17
    %v19 = vpop.xlane.xlu0 %18
    %s20 = sld [smem:[#allocation2]]
    %v21 = vstv %s20
    %v22 = vadd.f32 %v19, %v21
    %v23 = vmax.f32 %v22, 0.0
    %vm24 = vcmask 0
    %25 = vst.msk [vmem:[#allocation3] sm:$0x1] %vm24, %v23
    // Predicated region
    $region10: #{model_forward.1} parent=1 // pred_check
      _
    $region11: #{model_forward.1} parent=1 // pred_check_branch
      %27 = sbr.rel (0) target = $region13
    $region12: #{model_forward.1} parent=1 // pred_region
      %s29 = ssub.s32 16, 16
      %30 = vsyncadd [#allocation4], %s29
      %s32 = sshll.u32 [#allocation3], 4
      %s33 = int_to_ptr.vmem [resolvable:$true] %s32
      %35 = dma.vmem_to_hbm [thread:$0]  %s33, 16, %s2, [#allocation4]
    $region13: #{model_forward.1} parent=1 // pred_fallthru
      _
    // Predicated region
    $region14: #{model_forward.1} parent=1 // pred_check
      _
    $region15: #{model_forward.1} parent=1 // pred_check_branch
      %37 = sbr.rel (0) target = $region17
    $region16: #{model_forward.1} parent=1 // pred_region
      %38 = dma.done [#allocation4], 16
    $region17: #{model_forward.1} parent=1 // pred_fallthru
      _
    %39 = vsyncpa [#allocation4], 1

</llo_original>
